<compile_context>
chip_gen: v5e
topology: v5e:2x2
jax: 0.10.0
libtpu: 0.0.40
codegen_flags: <defaults>
</compile_context>

<pallas_src>
import functools
import math

import jax
import jax.numpy as jnp
from jax.experimental import pallas as pl
from jax.experimental.pallas import tpu as pltpu


def build_positional_table(max_seq_len: int, embed_dim: int) -> jnp.ndarray:
    """Reproduce the PyTorch `pe` buffer exactly, including the asymmetric
    2*i/d (sin at even column i) vs 2*(i+1)/d (cos at odd column i+1)
    exponents of the original double loop (i is the even column index)."""
    pos = jnp.arange(max_seq_len, dtype=jnp.float32)[:, None]          # (L, 1)
    i_even = jnp.arange(0, embed_dim, 2, dtype=jnp.float32)[None, :]   # (1, D/2)
    sin_vals = jnp.sin(pos / jnp.power(10000.0, 2.0 * i_even / embed_dim))
    cos_vals = jnp.cos(pos / jnp.power(10000.0, 2.0 * (i_even + 1.0) / embed_dim))
    pe = jnp.zeros((max_seq_len, embed_dim), dtype=jnp.float32)
    pe = pe.at[:, 0::2].set(sin_vals)
    pe = pe.at[:, 1::2].set(cos_vals)
    return pe                                                           # (L, D)


def _pos_embed_kernel(x_ref, pe_ref, o_ref, *, scale: float):
    # x_ref / o_ref: (row_block, col_block) lane-dense tiles of the flattened x.
    # pe_ref:        (1, col_block) tile of the flattened positional table;
    #                the (1, cols) shape broadcasts over the batch rows.
    o_ref[...] = (x_ref[...] * scale + pe_ref[...]).astype(o_ref.dtype)


def _round_up(x: int, m: int) -> int:
    return ((x + m - 1) // m) * m


def _cdiv(a: int, b: int) -> int:
    return (a + b - 1) // b


def _largest_divisor_block(full: int, target: int, multiple: int) -> int:
    """Largest multiple of `multiple` that divides `full` and is <= target.
    Precondition (guaranteed by wrapper padding): full % multiple == 0, so the
    search always succeeds with a block >= `multiple` (no runaway fallback)."""
    target = max(multiple, min(target, full))
    b = (target // multiple) * multiple
    while b > multiple and full % b != 0:
        b -= multiple
    return b


def positional_embedding(x: jnp.ndarray, pe: jnp.ndarray) -> jnp.ndarray:
    """x: (B, S, D), pe: (L, D) with L >= S. Returns x * sqrt(D) + pe[:S]."""
    B, S, D = x.shape
    scale = math.sqrt(D)
    dtype = x.dtype
    itemsize = jnp.dtype(dtype).itemsize
    sublane = max(8, 32 // itemsize)            # 8 f32, 16 bf16, 32 int8/fp8

    # ---- layout plumbing (views/pads, no compute): lane-dense flattening ----
    cols0 = S * D
    cols = _round_up(cols0, 128)                # guarantee unmasked 128-lane vst
    x2 = x.reshape(B, cols0)
    pe2 = pe[:S, :].reshape(1, cols0).astype(dtype)   # match x dtype
    if cols != cols0:
        x2 = jnp.pad(x2, ((0, 0), (0, cols - cols0)))
        pe2 = jnp.pad(pe2, ((0, 0), (0, cols - cols0)))

    # ---- tile sizing -------------------------------------------------------
    # ~8 MiB x-tiles (good for v7x's 3.2 TB/s HBM, fine on v6e/v5e); when B is
    # tiny the pe tile is as wide as the x tile, so halve the budget.
    target_tile_bytes = 8 * 1024 * 1024 if B > sublane else 4 * 1024 * 1024
    target_elems = max(128, target_tile_bytes // itemsize)

    # Require >= 4 grid steps (pipeline + v7x 2-TC sharding) once the problem
    # is big enough that per-step overhead is no longer the dominant cost.
    total_bytes = B * cols * itemsize
    min_total_steps = 4 if total_bytes >= 512 * 1024 else 1

    # Column block: budgeted so that a minimum-height row block still fits.
    min_row_block = B if B <= sublane else sublane
    col_target = max(128, target_elems // max(1, min_row_block))
    col_block = _largest_divisor_block(cols, col_target, 128)
    col_steps = cols // col_block
    # If rows cannot be split (tiny B) get the pipeline steps from columns.
    if min_total_steps > 1 and B <= sublane and col_steps < min_total_steps:
        col_block = _largest_divisor_block(
            cols, max(128, min(col_block, cols // min_total_steps)), 128)
        col_steps = cols // col_block

    # Row block: dtype-aware sublane multiple, padded rows so a divisor exists.
    if B <= sublane:
        rows = B
        row_block = B                            # full-dim block is always legal
    else:
        rows = _round_up(B, sublane)
        rows_budget = max(sublane, ((target_elems // col_block) // sublane) * sublane)
        needed_row_steps = _cdiv(min_total_steps, col_steps)
        rows_for_steps = max(sublane, _cdiv(rows, needed_row_steps))
        row_block = _largest_divisor_block(rows, min(rows_budget, rows_for_steps), sublane)
        if rows != B:
            x2 = jnp.pad(x2, ((0, rows - B), (0, 0)))
    row_steps = rows // row_block

    # Rows are the innermost (fastest-varying) grid axis: pe's block index is
    # constant across consecutive steps -> no redundant pe re-DMA.
    grid = (col_steps, row_steps)

    out2 = pl.pallas_call(
        functools.partial(_pos_embed_kernel, scale=scale),
        out_shape=jax.ShapeDtypeStruct((rows, cols), dtype),
        grid_spec=pl.GridSpec(
            grid=grid,
            in_specs=[
                pl.BlockSpec((row_block, col_block), lambda j, i: (i, j)),
                pl.BlockSpec((1, col_block), lambda j, i: (0, j)),
            ],
            out_specs=pl.BlockSpec((row_block, col_block), lambda j, i: (i, j)),
        ),
        compiler_params=pltpu.CompilerParams(
            dimension_semantics=("parallel", "parallel"),
            vmem_limit_bytes=48 * 1024 * 1024,
        ),
    )(x2, pe2)

    out2 = out2[:B, :cols0]
    return out2.reshape(B, S, D)


if __name__ == "__main__":
    # Module config: context_length=16, embedding_size=32
    MAX_SEQ_LEN = 16
    EMBED_DIM = 32

    B, S = 2, 8  # seq_len <= max_seq_len
    key = jax.random.PRNGKey(0)
    x = jax.random.normal(key, (B, S, EMBED_DIM), dtype=jnp.float32)
    pe = build_positional_table(MAX_SEQ_LEN, EMBED_DIM)

    out = jax.block_until_ready(positional_embedding(x, pe))

    # Reference check in plain JAX
    ref = x * math.sqrt(EMBED_DIM) + pe[None, :S, :]
    assert out.shape == (B, S, EMBED_DIM)
    assert out.dtype == x.dtype
    assert jnp.allclose(out, ref, atol=1e-5, rtol=1e-5)

    # Secondary check: non-128-divisible flattened width exercises the padded
    # lane-dense path (D=24 -> S*D=192, padded to 256 and sliced back).
    D2, S2, B2 = 24, 8, 4
    pe_b = build_positional_table(MAX_SEQ_LEN, D2)
    x_b = jax.random.normal(jax.random.PRNGKey(0), (B2, S2, D2), dtype=jnp.float32)
    out_b = jax.block_until_ready(positional_embedding(x_b, pe_b))
    ref_b = x_b * math.sqrt(D2) + pe_b[None, :S2, :]
    assert jnp.allclose(out_b, ref_b, atol=1e-5, rtol=1e-5)

    print("KERNEL_OK")
</pallas_src>

<mosaic_0001>
module attributes {stable_mosaic.version = 11 : i64} {
  func.func @_pos_embed_kernel(%arg0: i32, %arg1: i32, %arg2: memref<2x256xf32, #tpu.memory_space<vmem>>, %arg3: memref<1x256xf32, #tpu.memory_space<vmem>>, %arg4: memref<2x256xf32, #tpu.memory_space<vmem>>) attributes {dimension_semantics = [#tpu.dimension_semantics<parallel>, #tpu.dimension_semantics<parallel>], iteration_bounds = array<i64: 1, 1>, scalar_prefetch = 0 : i64, scratch_operands = 0 : i64, tpu.core_type = #tpu.core_type<tc>, window_params = [{transform_indices = @transform_0, window_bounds = array<i64: 2, 256>}, {transform_indices = @transform_1, window_bounds = array<i64: 1, 256>}, {transform_indices = @transform_2, window_bounds = array<i64: 2, 256>}]} {
    %c0 = arith.constant 0 : index
    %c0_0 = arith.constant 0 : index
    %0 = vector.load %arg2[%c0, %c0_0] : memref<2x256xf32, #tpu.memory_space<vmem>>, vector<2x256xf32>
    %cst = arith.constant 5.65685415 : f32
    %1 = vector.broadcast %cst : f32 to vector<2x256xf32>
    %2 = arith.mulf %0, %1 : vector<2x256xf32>
    %c0_1 = arith.constant 0 : index
    %c0_2 = arith.constant 0 : index
    %3 = vector.load %arg3[%c0_1, %c0_2] : memref<1x256xf32, #tpu.memory_space<vmem>>, vector<1x256xf32>
    %4 = vector.broadcast %3 : vector<1x256xf32> to vector<2x256xf32>
    %5 = arith.addf %2, %4 : vector<2x256xf32>
    %c0_3 = arith.constant 0 : index
    %c0_4 = arith.constant 0 : index
    %6 = vector.load %arg4[%c0_3, %c0_4] : memref<2x256xf32, #tpu.memory_space<vmem>>, vector<2x256xf32>
    tpu.vector_store %arg4[%c0_3, %c0_4], %5 {strides = array<i32>} : memref<2x256xf32, #tpu.memory_space<vmem>>, vector<2x256xf32>,
    return
  }
  func.func @transform_0(%arg0: i32, %arg1: i32) -> (i32, i32) {
    %c0_i32 = arith.constant 0 : i32
    return %arg1, %arg0 : i32, i32
  }
  func.func @transform_1(%arg0: i32, %arg1: i32) -> (i32, i32) {
    %c0_i32 = arith.constant 0 : i32
    %c0_i32_0 = arith.constant 0 : i32
    return %c0_i32, %arg0 : i32, i32
  }
  func.func @transform_2(%arg0: i32, %arg1: i32) -> (i32, i32) {
    %c0_i32 = arith.constant 0 : i32
    return %arg1, %arg0 : i32, i32
  }
}

</mosaic_0001>

<llo_original>
// kernel: tpu_custom_call.1
$region0: #{tpu_custom_call.1}
  #allocation0 [shape = 'u32[]', space=smem, size = 0x4, offset = 0x4, fixed_abs, tag = 'smem constant byte address 0x4 - core index']
  #allocation1 [shape = 'u32[72,128]{1,0:T(1,128)}', space=vmem, size = 0x9000, scoped, tag = 'internal scratch']
  %s0 = inlined_call_operand.hbm [shape: f32[2,256], index: 0, kind: input, shape index: {}]
  %s1 = inlined_call_operand.hbm [shape: f32[1,256], index: 1, kind: input, shape index: {}]
  %s2 = inlined_call_operand.hbm [shape: f32[2,256], index: 2, kind: output, shape index: {}]
  %s3 = sld [smem:[#allocation0]]
  $region26: #{tpu_custom_call.1} parent=0
    _
  %s5 = ssub.s32 1, %s3
  %s6 = scalar_select 0, %s5, %s3
  $region1: #{tpu_custom_call.1} parent=0
    #allocation2 [shape = 'u8[2048]{0}', space=vmem, size = 0x800, scoped, tag = 'input window, operand 0, single buffered']
    #allocation3 [shape = 's32[1]{0}', space=sflag, size = 0x4, scoped, tag = 'scoped memory for tpu_custom_call.1']
    #allocation4 [shape = 's32[1]{0}', space=sflag, size = 0x4, scoped, tag = 'scoped memory for tpu_custom_call.1']
    #allocation5 [shape = 'u8[1024]{0}', space=vmem, size = 0x400, scoped, tag = 'input window, operand 1, single buffered']
    #allocation6 [shape = 's32[1]{0}', space=sflag, size = 0x4, scoped, tag = 'scoped memory for tpu_custom_call.1']
    #allocation7 [shape = 'u8[2048]{0}', space=vmem, size = 0x800, scoped, tag = 'output window, operand 0, single buffered']
    %7 = vsyncpa [#allocation3], 0
    %8 = vsyncpa [#allocation6], 0
    %9 = vsyncpa [#allocation4], 0
    // Predicated region
    $region2: #{tpu_custom_call.1} parent=1 // pred_check
      _
    $region3: #{tpu_custom_call.1} parent=1 // pred_check_branch
      %11 = sbr.rel (0) target = $region5
    $region4: #{tpu_custom_call.1} parent=1 // pred_region
      %13 = vsyncadd [#allocation3], 0
      %s15 = sshll.u32 %s0, 4
      %s16 = int_to_ptr.hbm [resolvable:$true] %s15
      %s17 = sshll.u32 [#allocation2], 4
      %s18 = int_to_ptr.vmem [resolvable:$true] %s17
      %20 = dma.hbm_to_vmem [thread:$0]  %s16, 64, %s18, [#allocation3]
    $region5: #{tpu_custom_call.1} parent=1 // pred_fallthru
      _
    // Predicated region
    $region6: #{tpu_custom_call.1} parent=1 // pred_check
      _
    $region7: #{tpu_custom_call.1} parent=1 // pred_check_branch
      %22 = sbr.rel (0) target = $region9
    $region8: #{tpu_custom_call.1} parent=1 // pred_region
      %24 = vsyncadd [#allocation6], 0
      %s26 = sshll.u32 %s1, 4
      %s27 = int_to_ptr.hbm [resolvable:$true] %s26
      %s28 = sshll.u32 [#allocation5], 4
      %s29 = int_to_ptr.vmem [resolvable:$true] %s28
      %31 = dma.hbm_to_vmem [thread:$0]  %s27, 32, %s29, [#allocation6]
    $region9: #{tpu_custom_call.1} parent=1 // pred_fallthru
      _
    // Predicated region
    $region10: #{tpu_custom_call.1} parent=1 // pred_check
      _
    $region11: #{tpu_custom_call.1} parent=1 // pred_check_branch
      %33 = sbr.rel (0) target = $region13
    $region12: #{tpu_custom_call.1} parent=1 // pred_region
      %35 = dma.done [#allocation3], 64
    $region13: #{tpu_custom_call.1} parent=1 // pred_fallthru
      _
    // Predicated region
    $region14: #{tpu_custom_call.1} parent=1 // pred_check
      _
    $region15: #{tpu_custom_call.1} parent=1 // pred_check_branch
      %37 = sbr.rel (0) target = $region17
    $region16: #{tpu_custom_call.1} parent=1 // pred_region
      %39 = dma.done [#allocation6], 32
    $region17: #{tpu_custom_call.1} parent=1 // pred_fallthru
      _
    %v40 = vld [vmem:[#allocation2] sm:$0xf]
    %v41 = vmul.f32 %v40, 5.656854
    %v42 = vld [vmem:[#allocation5] sm:$0x3]
    %v44 = vperm.slane %v42, 0
    %v45 = vperm.slane %v42, 1
    %v46 = vrot.slane %v45, 6
    %vm47 = vcmask 1041408
    %v48 = vsel %vm47, %v44, %v46
    %v50 = vadd.f32 %v41, %v48
    %51 = vst [vmem:[#allocation7] sm:$0xf] %v50
    // Predicated region
    $region18: #{tpu_custom_call.1} parent=1 // pred_check
      _
    $region19: #{tpu_custom_call.1} parent=1 // pred_check_branch
      %53 = sbr.rel (0) target = $region21
    $region20: #{tpu_custom_call.1} parent=1 // pred_region
      %55 = vsyncadd [#allocation4], 0
      %s57 = sshll.u32 [#allocation7], 4
      %s58 = int_to_ptr.vmem [resolvable:$true] %s57
      %s59 = sshll.u32 %s2, 4
      %s60 = int_to_ptr.hbm [resolvable:$true] %s59
      %62 = dma.vmem_to_hbm [thread:$0]  %s58, 64, %s60, [#allocation4]
    $region21: #{tpu_custom_call.1} parent=1 // pred_fallthru
      _
    // Predicated region
    $region22: #{tpu_custom_call.1} parent=1 // pred_check
      _
    $region23: #{tpu_custom_call.1} parent=1 // pred_check_branch
      %64 = sbr.rel (0) target = $region25
    $region24: #{tpu_custom_call.1} parent=1 // pred_region
      %66 = dma.done [#allocation4], 64
    $region25: #{tpu_custom_call.1} parent=1 // pred_fallthru
      _
    %67 = vsyncpa [#allocation3], 1
    %68 = vsyncpa [#allocation6], 1
    %69 = vsyncpa [#allocation4], 1

</llo_original>
